<compile_context>
chip_gen: v6e
topology: v6e:2x2x1
jax: 0.10.0
libtpu: 0.0.40
codegen_flags: <defaults>
</compile_context>

<pallas_src>
import jax
import jax.numpy as jnp
import numpy as np
from jax.experimental import pallas as pl
from jax.experimental.pallas import tpu as pltpu  # noqa: F401  (kept for TPU-specific tuning hooks)

# ---------------- small shapes consistent with the module --------------------
B = 2     # batch
T = 8     # time / sequence length (softmax axis)
DIM = 32  # feature dim


def time_att_kernel(x_ref, w1_ref, w2_ref, out_ref):
    """x_ref: (B, T, DIM); w1_ref: (DIM, DIM) [pre-transposed so x @ w1 == linear1];
    w2_ref: (1, DIM) [linear2.weight row]; out_ref: (B, DIM)."""
    x = x_ref[...]                                   # (B, T, D)
    b, t, d = x.shape

    # --- linear1 + tanh over ALL B*T rows in one MXU matmul ---
    x2 = x.reshape(b * t, d)                         # cheap leading-dim merge
    h2 = jnp.tanh(jnp.dot(x2, w1_ref[...],
                          preferred_element_type=jnp.float32))   # (B*T, D)
    h3 = h2.reshape(b, t, d)

    # --- linear2 (dim -> 1, no bias): lane reduce against broadcast weight row
    s = jnp.sum(h3 * w2_ref[...], axis=-1, keepdims=True)        # (B, T, 1)

    # --- softmax over the time axis (axis=1), numerically stabilized ---
    m = jnp.max(s, axis=1, keepdims=True)                        # (B, 1, 1)
    e = jnp.exp(s - m)                                           # (B, T, 1)
    denom = jnp.sum(e, axis=1, keepdims=True)                    # (B, 1, 1)
    beta = e * pl.reciprocal(denom, approx=True)                 # (B, T, 1)

    # --- weighted sum over time: c[b, :] = sum_t beta[b, t] * x[b, t, :] ---
    c = jnp.sum(beta * x, axis=1)                                # (B, D)
    out_ref[...] = c.astype(out_ref.dtype)


def time_att(x, w1, w2):
    """x: (B, T, DIM) f32 -> (B, DIM) f32.  Single invocation, no grid:
    everything fits in VMEM, so per-grid-step overhead is pure loss."""
    b, t, d = x.shape
    return pl.pallas_call(
        time_att_kernel,
        out_shape=jax.ShapeDtypeStruct((b, d), jnp.float32),
    )(x, w1, w2)


# ---------------- pure-JAX reference (mirrors the PyTorch forward) -----------
def reference_forward(x, w1, w2):
    h = jnp.tanh(x @ w1)                                 # (B, T, D)
    y = jnp.sum(h * w2, axis=-1, keepdims=True)          # (B, T, 1) == h @ w2.T
    beta = jax.nn.softmax(y, axis=1)                     # softmax over time
    c = jnp.sum(beta * x, axis=1)                        # (B, D); .squeeze() no-op for B>1
    return c


if __name__ == "__main__":
    key = jax.random.PRNGKey(0)
    k0, k1, k2 = jax.random.split(key, 3)

    x = jax.random.normal(k0, (B, T, DIM), dtype=jnp.float32)
    # Weights stored transposed relative to PyTorch Linear so that x @ w works.
    w1 = (0.1 * jax.random.normal(k1, (DIM, DIM))).astype(jnp.float32)  # linear1.weight.T
    w2 = (0.1 * jax.random.normal(k2, (1, DIM))).astype(jnp.float32)    # linear2.weight (row)

    out = jax.block_until_ready(time_att(x, w1, w2))
    ref = reference_forward(x, w1, w2)

    # Tolerance relaxed slightly for the EUP approximate reciprocal in the
    # softmax denominator (a real structural bug would be orders of magnitude larger).
    np.testing.assert_allclose(np.asarray(out), np.asarray(ref), rtol=2e-3, atol=1e-3)

    print("KERNEL_OK")
</pallas_src>

<mosaic_0001>
module attributes {stable_mosaic.version = 11 : i64} {
  func.func @time_att_kernel(%arg0: memref<2x8x32xf32, #tpu.memory_space<vmem>>, %arg1: memref<32x32xf32, #tpu.memory_space<vmem>>, %arg2: memref<1x32xf32, #tpu.memory_space<vmem>>, %arg3: memref<2x32xf32, #tpu.memory_space<vmem>>) attributes {dimension_semantics = [], scalar_prefetch = 0 : i64, scratch_operands = 0 : i64, tpu.core_type = #tpu.core_type<tc>} {
    %c0 = arith.constant 0 : index
    %c0_0 = arith.constant 0 : index
    %c0_1 = arith.constant 0 : index
    %0 = vector.load %arg0[%c0, %c0_0, %c0_1] : memref<2x8x32xf32, #tpu.memory_space<vmem>>, vector<2x8x32xf32>
    %1 = vector.shape_cast %0 : vector<2x8x32xf32> to vector<16x32xf32>
    %c0_2 = arith.constant 0 : index
    %c0_3 = arith.constant 0 : index
    %2 = vector.load %arg1[%c0_2, %c0_3] : memref<32x32xf32, #tpu.memory_space<vmem>>, vector<32x32xf32>
    %cst = arith.constant dense<0.000000e+00> : vector<16x32xf32>
    %3 = tpu.matmul %1, %2, %cst {dimension_numbers = #tpu.dot_dimension_numbers<[1], [0], [0], [1], [0, 0, 1, 1], [], []>} : vector<16x32xf32>, vector<32x32xf32>, vector<16x32xf32> -> vector<16x32xf32>
    %4 = math.tanh %3 : vector<16x32xf32>
    %5 = vector.shape_cast %4 : vector<16x32xf32> to vector<2x8x32xf32>
    %c0_4 = arith.constant 0 : index
    %c0_5 = arith.constant 0 : index
    %6 = vector.load %arg2[%c0_4, %c0_5] : memref<1x32xf32, #tpu.memory_space<vmem>>, vector<1x32xf32>
    %7 = vector.shape_cast %6 : vector<1x32xf32> to vector<1x1x32xf32>
    %8 = vector.broadcast %7 : vector<1x1x32xf32> to vector<2x8x32xf32>
    %9 = arith.mulf %5, %8 : vector<2x8x32xf32>
    %cst_6 = arith.constant dense<0.000000e+00> : vector<2x8xf32>
    %10 = vector.multi_reduction <add>, %9, %cst_6 [2] : vector<2x8x32xf32> to vector<2x8xf32>
    %11 = vector.shape_cast %10 : vector<2x8xf32> to vector<2x8x1xf32>
    %cst_7 = arith.constant dense<0xFF800000> : vector<2x1xf32>
    %12 = vector.multi_reduction <maximumf>, %11, %cst_7 [1] : vector<2x8x1xf32> to vector<2x1xf32>
    %13 = vector.shape_cast %12 : vector<2x1xf32> to vector<2x1x1xf32>
    %14 = vector.broadcast %13 : vector<2x1x1xf32> to vector<2x8x1xf32>
    %15 = arith.subf %11, %14 : vector<2x8x1xf32>
    %16 = math.exp %15 : vector<2x8x1xf32>
    %cst_8 = arith.constant dense<0.000000e+00> : vector<2x1xf32>
    %17 = vector.multi_reduction <add>, %16, %cst_8 [1] : vector<2x8x1xf32> to vector<2x1xf32>
    %18 = vector.shape_cast %17 : vector<2x1xf32> to vector<2x1x1xf32>
    %19 = tpu.reciprocal %18 {approx = true} : vector<2x1x1xf32> -> vector<2x1x1xf32>
    %20 = vector.broadcast %19 : vector<2x1x1xf32> to vector<2x8x1xf32>
    %21 = arith.mulf %16, %20 : vector<2x8x1xf32>
    %22 = vector.broadcast %21 : vector<2x8x1xf32> to vector<2x8x32xf32>
    %23 = arith.mulf %22, %0 : vector<2x8x32xf32>
    %cst_9 = arith.constant dense<0.000000e+00> : vector<2x32xf32>
    %24 = vector.multi_reduction <add>, %23, %cst_9 [1] : vector<2x8x32xf32> to vector<2x32xf32>
    %c0_10 = arith.constant 0 : index
    %c0_11 = arith.constant 0 : index
    %25 = vector.load %arg3[%c0_10, %c0_11] : memref<2x32xf32, #tpu.memory_space<vmem>>, vector<2x32xf32>
    tpu.vector_store %arg3[%c0_10, %c0_11], %24 {strides = array<i32>} : memref<2x32xf32, #tpu.memory_space<vmem>>, vector<2x32xf32>,
    return
  }
}

</mosaic_0001>

<llo_original>
// kernel: tpu_custom_call.1
$region0: #{tpu_custom_call.1}
  #allocation0 [shape = 'u32[]', space=smem, size = 0x4, offset = 0x4, fixed_abs, tag = 'smem constant byte address 0x4 - core index']
  #allocation1 [shape = 'u32[144,128]{1,0:T(1,128)}', space=vmem, size = 0x12000, scoped, tag = 'internal scratch']
  %s0 = inlined_call_operand.hbm [shape: f32[2,8,32], index: 0, kind: input, shape index: {}]
  %s1 = inlined_call_operand.hbm [shape: f32[32,32], index: 1, kind: input, shape index: {}]
  %s2 = inlined_call_operand.vmem [shape: f32[1,32], index: 2, kind: input, shape index: {}]
  %s3 = inlined_call_operand.hbm [shape: f32[2,32], index: 3, kind: output, shape index: {}]
  %s4 = sld [smem:[#allocation0]]
  $region30: #{tpu_custom_call.1} parent=0
    _
  %s6 = ssub.s32 1, %s4
  %s7 = scalar_select 0, %s6, %s4
  $region1: #{tpu_custom_call.1} parent=0
    #allocation2 [shape = 'u8[8192]{0}', space=vmem, size = 0x2000, scoped, tag = 'input window, operand 0, single buffered']
    #allocation3 [shape = 's32[1]{0}', space=sflag, size = 0x4, scoped, tag = 'scoped memory for tpu_custom_call.1']
    #allocation4 [shape = 's32[1]{0}', space=sflag, size = 0x4, scoped, tag = 'scoped memory for tpu_custom_call.1']
    #allocation5 [shape = 'u8[16384]{0}', space=vmem, size = 0x4000, scoped, tag = 'input window, operand 1, single buffered']
    #allocation6 [shape = 's32[1]{0}', space=sflag, size = 0x4, scoped, tag = 'scoped memory for tpu_custom_call.1']
    #allocation7 [shape = 'u8[1024]{0}', space=vmem, size = 0x400, scoped, tag = 'output window, operand 0, single buffered']
    %8 = vsyncpa [#allocation3], 0
    %9 = vsyncpa [#allocation6], 0
    %10 = vsyncpa [#allocation4], 0
    // Predicated region
    $region2: #{tpu_custom_call.1} parent=1 // pred_check
      _
    $region3: #{tpu_custom_call.1} parent=1 // pred_check_branch
      %12 = sbr.rel (0) target = $region5
    $region4: #{tpu_custom_call.1} parent=1 // pred_region
      %s14 = ssub.s32 256, 256
      %15 = vsyncadd [#allocation3], %s14
      %s16 = sshll.u32 [#allocation2], 4
      %s17 = int_to_ptr.vmem [resolvable:$true] %s16
      %22 = dma.hbm_to_vmem [thread:$0]  %s0, 256, %s17, [#allocation3], 128, 128, 8
    $region5: #{tpu_custom_call.1} parent=1 // pred_fallthru
      _
    // Predicated region
    $region6: #{tpu_custom_call.1} parent=1 // pred_check
      _
    $region7: #{tpu_custom_call.1} parent=1 // pred_check_branch
      %24 = sbr.rel (0) target = $region9
    $region8: #{tpu_custom_call.1} parent=1 // pred_region
      %s26 = ssub.s32 512, 512
      %27 = vsyncadd [#allocation6], %s26
      %s28 = sshll.u32 [#allocation5], 4
      %s29 = int_to_ptr.vmem [resolvable:$true] %s28
      %34 = dma.hbm_to_vmem [thread:$0]  %s1, 512, %s29, [#allocation6], 128, 128, 8
    $region9: #{tpu_custom_call.1} parent=1 // pred_fallthru
      _
    // Predicated region
    $region10: #{tpu_custom_call.1} parent=1 // pred_check
      _
    $region11: #{tpu_custom_call.1} parent=1 // pred_check_branch
      %36 = sbr.rel (0) target = $region13
    $region12: #{tpu_custom_call.1} parent=1 // pred_region
      _
    $region13: #{tpu_custom_call.1} parent=1 // pred_fallthru
      _
    // Predicated region
    $region14: #{tpu_custom_call.1} parent=1 // pred_check
      _
    $region15: #{tpu_custom_call.1} parent=1 // pred_check_branch
      %38 = sbr.rel (0) target = $region17
    $region16: #{tpu_custom_call.1} parent=1 // pred_region
      %39 = dma.done [#allocation3], 256
    $region17: #{tpu_custom_call.1} parent=1 // pred_fallthru
      _
    // Predicated region
    $region18: #{tpu_custom_call.1} parent=1 // pred_check
      _
    $region19: #{tpu_custom_call.1} parent=1 // pred_check_branch
      %41 = sbr.rel (0) target = $region21
    $region20: #{tpu_custom_call.1} parent=1 // pred_region
      %42 = dma.done [#allocation6], 512
    $region21: #{tpu_custom_call.1} parent=1 // pred_fallthru
      _
    %v43 = vld [vmem:[#allocation2] sm:$0xff]
    %v44 = vld [vmem:[#allocation2 + $0x8] sm:$0xff]
    %v45 = vld [vmem:[#allocation5] sm:$0xff]
    %v46 = vld [vmem:[#allocation5 + $0x8] sm:$0xff]
    %v47 = vld [vmem:[#allocation5 + $0x10] sm:$0xff]
    %v48 = vld [vmem:[#allocation5 + $0x18] sm:$0xff]
    %vm49 = vcmask 261120
    %v51 = vsel %vm49, %v43, 0
    %v54 = vsel %vm49, %v44, 0
    %56 = vmatprep.subr.mxu0 0.0
    %57 = vmatpush1.msra.mxu0 0.0
    %58 = vmatprep.subr.mxu0 0.0
    %59 = vmatpush1.msra.mxu0 0.0
    %60 = vmatprep.subr.mxu0 0.0
    %61 = vmatpush1.msra.mxu0 0.0
    %62 = vmatprep.subr.mxu0 0.0
    %63 = vmatpush1.msra.mxu0 0.0
    %64 = vmatprep.subr.mxu0 0.0
    %65 = vmatpush1.msra.mxu0 0.0
    %66 = vmatprep.subr.mxu0 0.0
    %67 = vmatpush1.msra.mxu0 0.0
    %68 = vmatprep.subr.mxu0 0.0
    %69 = vmatpush1.msra.mxu0 0.0
    %70 = vmatprep.subr.mxu0 0.0
    %71 = vmatpush1.msra.mxu0 0.0
    %72 = vmatprep.subr.mxu0 0.0
    %73 = vmatpush1.msra.mxu0 0.0
    %74 = vmatprep.subr.mxu0 0.0
    %75 = vmatpush1.msra.mxu0 0.0
    %76 = vmatprep.subr.mxu0 0.0
    %77 = vmatpush1.msra.mxu0 0.0
    %78 = vmatprep.subr.mxu0 0.0
    %79 = vmatpush1.msra.mxu0 0.0
    %80 = vmatprep.subr.mxu0 0.0
    %81 = vmatpush1.msra.mxu0 %v48
    %82 = vmatprep.subr.mxu0 0.0
    %83 = vmatpush1.msra.mxu0 %v47
    %84 = vmatprep.subr.mxu0 0.0
    %85 = vmatpush1.msra.mxu0 %v46
    %86 = vmatprep.subr.mxu0 0.0
    %87 = vmatpush1.msra.mxu0 %v45
    %88 = vmatprep.subr.mxu0 0.0
    %89 = vmatpush2.msra.mxu0 0.0
    %90 = vmatprep.subr.mxu0 0.0
    %91 = vmatpush2.msra.mxu0 0.0
    %92 = vmatprep.subr.mxu0 0.0
    %93 = vmatpush2.msra.mxu0 0.0
    %94 = vmatprep.subr.mxu0 0.0
    %95 = vmatpush2.msra.mxu0 0.0
    %96 = vmatprep.subr.mxu0 0.0
    %97 = vmatpush2.msra.mxu0 0.0
    %98 = vmatprep.subr.mxu0 0.0
    %99 = vmatpush2.msra.mxu0 0.0
    %100 = vmatprep.subr.mxu0 0.0
    %101 = vmatpush2.msra.mxu0 0.0
    %102 = vmatprep.subr.mxu0 0.0
    %103 = vmatpush2.msra.mxu0 0.0
    %104 = vmatprep.subr.mxu0 0.0
    %105 = vmatpush2.msra.mxu0 0.0
    %106 = vmatprep.subr.mxu0 0.0
    %107 = vmatpush2.msra.mxu0 0.0
    %108 = vmatprep.subr.mxu0 0.0
    %109 = vmatpush2.msra.mxu0 0.0
    %110 = vmatprep.subr.mxu0 0.0
    %111 = vmatpush2.msra.mxu0 0.0
    %112 = vmatprep.subr.mxu0 0.0
    %113 = vmatpush2.msra.mxu0 0.0
    %114 = vmatprep.subr.mxu0 0.0
    %115 = vmatpush2.msra.mxu0 0.0
    %116 = vmatprep.subr.mxu0 0.0
    %117 = vmatpush2.msra.mxu0 0.0
    %118 = vmatprep.subr.mxu0 0.0
    %119 = vmatpush2.msra.mxu0 0.0
    %120 = vmatprep.mubr.f32.mxu0 0.0
    %121 = vmatmul.mubr.f32.gmra.mxu0 %v51
    %v122 = vpop.f32.mrf.mxu0
    %v123 = vadd.f32 0.0, %v122
    %v124 = vpop.f32.mrf.mxu0
    %125 = vmatprep.mubr.f32.mxu0 0.0
    %126 = vmatmul.mubr.f32.gmra.mxu0 %v54
    %v127 = vpop.f32.mrf.mxu0
    %v128 = vadd.f32 0.0, %v127
    %v129 = vpop.f32.mrf.mxu0
    %130 = vdwg.mxu0
    %v131 = vtanh.pop %v123
    %v132 = vtanh.pop %v128
    %v133 = vld [vmem:[%s2] sm:$0x1]
    %v135 = vlaneseq
    %v136 = vshrl.u32 %v135, 7
    %v137 = vsub.s32 0, %v136
    %v138 = vrot.slane %v133, %v137
    %v140 = vmul.f32 %v131, %v138
    %v141 = vmul.f32 %v132, %v138
    %v142 = vsel %vm49, %v140, 0.0
    %143 = vadd.xlane.f32.xlu0 %v142
    %v144 = vpop.xlane.xlu0 %143
    %v145 = vsel %vm49, %v141, 0.0
    %146 = vadd.xlane.f32.xlu0 %v145
    %v147 = vpop.xlane.xlu0 %146
    %v148 = vrot.slane %v144, 4
    %v149 = vmax.f32 %v144, %v148
    %v150 = vrot.slane %v149, 2
    %v151 = vmax.f32 %v149, %v150
    %v152 = vrot.slane %v151, 1
    %v153 = vmax.f32 %v151, %v152
    %v154 = vrot.slane %v147, 4
    %v155 = vmax.f32 %v147, %v154
    %v156 = vrot.slane %v155, 2
    %v157 = vmax.f32 %v155, %v156
    %v158 = vrot.slane %v157, 1
    %v159 = vmax.f32 %v157, %v158
    %v160 = vsub.f32 %v144, %v153
    %v161 = vsub.f32 %v147, %v159
    %v162 = vmul.f32 %v160, 1.442695
    %v163 = vpow.pop %v162
    %v164 = vmul.f32 %v161, 1.442695
    %v165 = vpow.pop %v164
    %v166 = vrot.slane %v163, 4
    %v167 = vadd.f32 %v163, %v166
    %v168 = vrot.slane %v167, 2
    %v169 = vadd.f32 %v167, %v168
    %v170 = vrot.slane %v169, 1
    %v171 = vadd.f32 %v169, %v170
    %v172 = vrot.slane %v165, 4
    %v173 = vadd.f32 %v165, %v172
    %v174 = vrot.slane %v173, 2
    %v175 = vadd.f32 %v173, %v174
    %v176 = vrot.slane %v175, 1
    %v177 = vadd.f32 %v175, %v176
    %v178 = vrcp.pop %v171
    %v179 = vrcp.pop %v177
    %v180 = vmul.f32 %v163, %v178
    %v181 = vmul.f32 %v165, %v179
    %v182 = vmul.f32 %v180, %v43
    %v183 = vmul.f32 %v181, %v44
    %v184 = vsel %vm49, %v182, 0.0
    %v185 = vrot.slane %v184, 4
    %v186 = vadd.f32 %v184, %v185
    %v187 = vrot.slane %v186, 2
    %v188 = vadd.f32 %v186, %v187
    %v189 = vrot.slane %v188, 1
    %v190 = vadd.f32 %v188, %v189
    %v191 = vsel %vm49, %v183, 0.0
    %v192 = vrot.slane %v191, 4
    %v193 = vadd.f32 %v191, %v192
    %v194 = vrot.slane %v193, 2
    %v195 = vadd.f32 %v193, %v194
    %v196 = vrot.slane %v195, 1
    %v197 = vadd.f32 %v195, %v196
    %vm200 = vcmask 1041409
    %v201 = vsel %vm200, %v197, %v190
    %vm203 = vcmask 254976
    %204 = vst.msk [vmem:[#allocation7] sm:$0x3] %vm203, %v201
    // Predicated region
    $region22: #{tpu_custom_call.1} parent=1 // pred_check
      _
    $region23: #{tpu_custom_call.1} parent=1 // pred_check_branch
      %206 = sbr.rel (0) target = $region25
    $region24: #{tpu_custom_call.1} parent=1 // pred_region
      %s208 = ssub.s32 32, 32
      %209 = vsyncadd [#allocation4], %s208
      %s211 = sshll.u32 [#allocation7], 4
      %s212 = int_to_ptr.vmem [resolvable:$true] %s211
      %214 = dma.vmem_to_hbm [thread:$0]  %s212, 32, %s3, [#allocation4]
    $region25: #{tpu_custom_call.1} parent=1 // pred_fallthru
      _
    // Predicated region
    $region26: #{tpu_custom_call.1} parent=1 // pred_check
      _
    $region27: #{tpu_custom_call.1} parent=1 // pred_check_branch
      %216 = sbr.rel (0) target = $region29
    $region28: #{tpu_custom_call.1} parent=1 // pred_region
      %217 = dma.done [#allocation4], 32
    $region29: #{tpu_custom_call.1} parent=1 // pred_fallthru
      _
    %218 = vsyncpa [#allocation3], 1
    %219 = vsyncpa [#allocation6], 1
    %220 = vsyncpa [#allocation4], 1

</llo_original>
